<compile_context>
chip_gen: v6e
topology: v6e:2x2x1
jax: 0.10.0
libtpu: 0.0.40
codegen_flags: <defaults>
</compile_context>

<pallas_src>
import functools

import jax
import jax.numpy as jnp
from jax.experimental import pallas as pl
from jax.experimental.pallas import tpu as pltpu


def _round_up(x, m):
    return ((x + m - 1) // m) * m


def _pick_tile(dim, align, cap):
    """Return (tile, padded_dim): tile is `align`-aligned, <= cap, divides padded_dim."""
    padded = _round_up(dim, align)
    if padded <= cap:
        return padded, padded
    for cand in (cap, 384, 256, 128):
        if cand % align == 0 and padded % cand == 0:
            return cand, padded
    return cap, _round_up(dim, cap)


def _patch_embed_kernel(x_ref, w_ref, b_ref, o_ref, acc_ref):
    # x_ref: (tm, tk) bf16 patches, w_ref: (tk, tn) bf16, b_ref: (1, tn) f32,
    # o_ref: (tm, tn) out dtype, acc_ref: (tm, tn) f32 scratch.
    k = pl.program_id(2)

    @pl.when(k == 0)
    def _init():
        # Seed the accumulator with the broadcast bias: saves a separate
        # M x N VPU add pass in the epilogue.
        acc_ref[...] = jnp.broadcast_to(b_ref[...], acc_ref.shape)

    acc_ref[...] += jnp.dot(
        x_ref[...], w_ref[...], preferred_element_type=jnp.float32
    )

    @pl.when(k == pl.num_programs(2) - 1)
    def _store():
        o_ref[...] = acc_ref[...].astype(o_ref.dtype)


def patch_embedding(x, weight, bias, patch_size, *, compute_dtype=jnp.bfloat16):
    """x: (B, C, H, W); weight: (E, C, P, P) (PyTorch conv layout); bias: (E,).

    Returns (B, num_patches, E), matching PatchEmbedding.forward.
    """
    B, C, H, W = x.shape
    E = weight.shape[0]
    P = patch_size
    assert H % P == 0 and W % P == 0, "H and W must be divisible by patch_size"
    Ho, Wo = H // P, W // P
    nP = Ho * Wo

    # --- glue: extract non-overlapping patches, flatten as (c, kh, kw) ---
    # (B, C, Ho, P, Wo, P) -> (B, Ho, Wo, C, P, P) -> (B*nP, C*P*P)
    xp = x.reshape(B, C, Ho, P, Wo, P)
    xp = jnp.transpose(xp, (0, 2, 4, 1, 3, 5)).reshape(B * nP, C * P * P)

    # conv weight (E, C, P, P) -> matmul weight (C*P*P, E); contraction order
    # (c, kh, kw) matches the patch flattening above.
    w_mat = weight.reshape(E, C * P * P).T          # (K, N)
    b_mat = bias.reshape(1, E).astype(jnp.float32)  # (1, N)

    M, K = xp.shape
    N = E

    # (8,128)-aligned tiles, capped at 512 for cross-generation VMEM safety.
    tm, Mp = _pick_tile(M, 8, 512)
    tk, Kp = _pick_tile(K, 128, 512)
    tn, Np = _pick_tile(N, 128, 512)

    # bf16 operands, zero-padded to aligned sizes (zero K-padding is exact;
    # padded M rows / N cols are sliced away below).
    xp_c = xp.astype(compute_dtype)
    w_c = w_mat.astype(compute_dtype)
    if (Mp, Kp) != (M, K):
        xp_c = jnp.pad(xp_c, ((0, Mp - M), (0, Kp - K)))
    if (Kp, Np) != (K, N):
        w_c = jnp.pad(w_c, ((0, Kp - K), (0, Np - N)))
    if Np != N:
        b_mat = jnp.pad(b_mat, ((0, 0), (0, Np - N)))

    grid = (Mp // tm, Np // tn, Kp // tk)
    itemsize = jnp.dtype(compute_dtype).itemsize
    out_itemsize = jnp.dtype(x.dtype).itemsize

    out = pl.pallas_call(
        _patch_embed_kernel,
        out_shape=jax.ShapeDtypeStruct((Mp, Np), x.dtype),
        grid_spec=pltpu.PrefetchScalarGridSpec(
            num_scalar_prefetch=0,
            grid=grid,
            in_specs=[
                pl.BlockSpec((tm, tk), lambda i, j, k: (i, k)),  # patches
                pl.BlockSpec((tk, tn), lambda i, j, k: (k, j)),  # weight
                pl.BlockSpec((1, tn), lambda i, j, k: (0, j)),   # bias
            ],
            out_specs=pl.BlockSpec((tm, tn), lambda i, j, k: (i, j)),
            scratch_shapes=[pltpu.VMEM((tm, tn), jnp.float32)],
        ),
        compiler_params=pltpu.CompilerParams(
            dimension_semantics=("parallel", "parallel", "arbitrary"),
            vmem_limit_bytes=32 * 1024 * 1024,
        ),
        cost_estimate=pl.CostEstimate(
            flops=2 * Mp * Kp * Np,
            transcendentals=0,
            bytes_accessed=(
                Mp * Kp * itemsize + Kp * Np * itemsize + Mp * Np * out_itemsize
            ),
        ),
    )(xp_c, w_c, b_mat)

    return out[:M, :N].reshape(B, nP, E)


if __name__ == "__main__":
    # small shapes consistent with the module
    B, C, H, W = 2, 4, 16, 16
    P = 4                 # patch_size
    E = 32                # embedding_dim
    nP = (H // P) * (W // P)

    key = jax.random.PRNGKey(0)
    kx, kw, kb = jax.random.split(key, 3)
    x = jax.random.normal(kx, (B, C, H, W), dtype=jnp.float32)
    # deterministic synthetic params (PyTorch conv weight layout: E, C, P, P)
    weight = jax.random.normal(kw, (E, C, P, P), dtype=jnp.float32) * 0.02
    bias = jax.random.normal(kb, (E,), dtype=jnp.float32) * 0.02

    patch_embed = jax.jit(patch_embedding, static_argnums=(3,))
    out = jax.block_until_ready(patch_embed(x, weight, bias, P))
    assert out.shape == (B, nP, E), out.shape

    # references
    xp = x.reshape(B, C, H // P, P, W // P, P)
    xp = jnp.transpose(xp, (0, 2, 4, 1, 3, 5)).reshape(B * nP, C * P * P)
    w_mat = weight.reshape(E, -1).T

    # (a) same bf16 input rounding, f32 accumulation -> tight tolerance
    ref_bf16 = (
        xp.astype(jnp.bfloat16).astype(jnp.float32)
        @ w_mat.astype(jnp.bfloat16).astype(jnp.float32)
        + bias
    ).reshape(B, nP, E)
    assert jnp.allclose(out, ref_bf16, atol=1e-3, rtol=1e-3), float(
        jnp.max(jnp.abs(out - ref_bf16))
    )

    # (b) full-f32 reference -> loose tolerance (bf16 operand rounding)
    ref_f32 = (xp @ w_mat + bias).reshape(B, nP, E)
    assert jnp.allclose(out, ref_f32, atol=5e-2, rtol=5e-2), float(
        jnp.max(jnp.abs(out - ref_f32))
    )

    print("KERNEL_OK")
</pallas_src>

<mosaic_0001>
module attributes {stable_mosaic.version = 11 : i64} {
  func.func @_patch_embed_kernel(%arg0: i32, %arg1: i32, %arg2: i32, %arg3: memref<32x128xbf16, #tpu.memory_space<vmem>>, %arg4: memref<128x128xbf16, #tpu.memory_space<vmem>>, %arg5: memref<1x128xf32, #tpu.memory_space<vmem>>, %arg6: memref<32x128xf32, #tpu.memory_space<vmem>>, %arg7: memref<32x128xf32, #tpu.memory_space<vmem>>) attributes {dimension_semantics = [#tpu.dimension_semantics<parallel>, #tpu.dimension_semantics<parallel>, #tpu.dimension_semantics<arbitrary>], iteration_bounds = array<i64: 1, 1, 1>, scalar_prefetch = 0 : i64, scratch_operands = 1 : i64, tpu.core_type = #tpu.core_type<tc>, window_params = [{transform_indices = @transform_0, window_bounds = array<i64: 32, 128>}, {transform_indices = @transform_1, window_bounds = array<i64: 128, 128>}, {transform_indices = @transform_2, window_bounds = array<i64: 1, 128>}, {transform_indices = @transform_3, window_bounds = array<i64: 32, 128>}]} {
    %c0_i32 = arith.constant 0 : i32
    %0 = arith.cmpi eq, %arg2, %c0_i32 : i32
    %1 = arith.extui %0 : i1 to i32
    %c0_i32_0 = arith.constant 0 : i32
    %2 = arith.cmpi ne, %1, %c0_i32_0 : i32
    scf.if %2 {
      %c0_10 = arith.constant 0 : index
      %c0_11 = arith.constant 0 : index
      %12 = vector.load %arg5[%c0_10, %c0_11] : memref<1x128xf32, #tpu.memory_space<vmem>>, vector<1x128xf32>
      %13 = vector.shape_cast %12 : vector<1x128xf32> to vector<1x128xf32>
      %14 = vector.broadcast %13 : vector<1x128xf32> to vector<32x128xf32>
      %c0_12 = arith.constant 0 : index
      %c0_13 = arith.constant 0 : index
      %15 = vector.load %arg7[%c0_12, %c0_13] : memref<32x128xf32, #tpu.memory_space<vmem>>, vector<32x128xf32>
      tpu.vector_store %arg7[%c0_12, %c0_13], %14 {strides = array<i32>} : memref<32x128xf32, #tpu.memory_space<vmem>>, vector<32x128xf32>,
    } else {
    }
    %c0 = arith.constant 0 : index
    %c0_1 = arith.constant 0 : index
    %3 = vector.load %arg7[%c0, %c0_1] : memref<32x128xf32, #tpu.memory_space<vmem>>, vector<32x128xf32>
    %c0_2 = arith.constant 0 : index
    %c0_3 = arith.constant 0 : index
    %4 = vector.load %arg3[%c0_2, %c0_3] : memref<32x128xbf16, #tpu.memory_space<vmem>>, vector<32x128xbf16>
    %c0_4 = arith.constant 0 : index
    %c0_5 = arith.constant 0 : index
    %5 = vector.load %arg4[%c0_4, %c0_5] : memref<128x128xbf16, #tpu.memory_space<vmem>>, vector<128x128xbf16>
    %cst = arith.constant dense<0.000000e+00> : vector<32x128xf32>
    %6 = tpu.matmul %4, %5, %cst {dimension_numbers = #tpu.dot_dimension_numbers<[1], [0], [0], [1], [0, 0, 1, 1], [], []>} : vector<32x128xbf16>, vector<128x128xbf16>, vector<32x128xf32> -> vector<32x128xf32>
    %7 = arith.addf %3, %6 : vector<32x128xf32>
    %c0_6 = arith.constant 0 : index
    %c0_7 = arith.constant 0 : index
    %8 = vector.load %arg7[%c0_6, %c0_7] : memref<32x128xf32, #tpu.memory_space<vmem>>, vector<32x128xf32>
    tpu.vector_store %arg7[%c0_6, %c0_7], %7 {strides = array<i32>} : memref<32x128xf32, #tpu.memory_space<vmem>>, vector<32x128xf32>,
    %c0_i32_8 = arith.constant 0 : i32
    %9 = arith.cmpi eq, %arg2, %c0_i32_8 : i32
    %10 = arith.extui %9 : i1 to i32
    %c0_i32_9 = arith.constant 0 : i32
    %11 = arith.cmpi ne, %10, %c0_i32_9 : i32
    scf.if %11 {
      %c0_10 = arith.constant 0 : index
      %c0_11 = arith.constant 0 : index
      %12 = vector.load %arg7[%c0_10, %c0_11] : memref<32x128xf32, #tpu.memory_space<vmem>>, vector<32x128xf32>
      %c0_12 = arith.constant 0 : index
      %c0_13 = arith.constant 0 : index
      %13 = vector.load %arg6[%c0_12, %c0_13] : memref<32x128xf32, #tpu.memory_space<vmem>>, vector<32x128xf32>
      tpu.vector_store %arg6[%c0_12, %c0_13], %12 {strides = array<i32>} : memref<32x128xf32, #tpu.memory_space<vmem>>, vector<32x128xf32>,
    } else {
    }
    return
  }
  func.func @transform_0(%arg0: i32, %arg1: i32, %arg2: i32) -> (i32, i32) {
    %c0_i32 = arith.constant 0 : i32
    return %arg0, %arg2 : i32, i32
  }
  func.func @transform_1(%arg0: i32, %arg1: i32, %arg2: i32) -> (i32, i32) {
    %c0_i32 = arith.constant 0 : i32
    return %arg2, %arg1 : i32, i32
  }
  func.func @transform_2(%arg0: i32, %arg1: i32, %arg2: i32) -> (i32, i32) {
    %c0_i32 = arith.constant 0 : i32
    %c0_i32_0 = arith.constant 0 : i32
    return %c0_i32, %arg1 : i32, i32
  }
  func.func @transform_3(%arg0: i32, %arg1: i32, %arg2: i32) -> (i32, i32) {
    %c0_i32 = arith.constant 0 : i32
    return %arg0, %arg1 : i32, i32
  }
}

</mosaic_0001>

<llo_original>
// kernel: patch_embedding.1
$region0: #{patch_embedding.1}
  #allocation0 [shape = 'u32[]', space=smem, size = 0x4, offset = 0x4, fixed_abs, tag = 'smem constant byte address 0x4 - core index']
  #allocation1 [shape = 'u32[144,128]{1,0:T(1,128)}', space=vmem, size = 0x12000, scoped, tag = 'internal scratch']
  #allocation2 [shape = 'f32[32,128]{1,0:T(8,128)}', space=vmem, size = 0x4000, scoped, tag = 'scratch operand']
  %s0 = inlined_call_operand.vmem [shape: bf16[32,128], index: 0, kind: input, shape index: {}]
  %s1 = inlined_call_operand.vmem [shape: bf16[128,128], index: 1, kind: input, shape index: {}]
  %s2 = inlined_call_operand.vmem [shape: f32[1,128], index: 2, kind: input, shape index: {}]
  %s3 = inlined_call_operand.hbm [shape: f32[32,128], index: 3, kind: output, shape index: {}]
  %s4 = sld [smem:[#allocation0]]
  $region30: #{patch_embedding.1} parent=0
    _
  %s6 = ssub.s32 1, %s4
  %s7 = scalar_select 0, %s6, %s4
  $region1: #{patch_embedding.1} parent=0
    #allocation3 [shape = 'u8[16384]{0}', space=vmem, size = 0x4000, scoped, tag = 'output window, operand 0, single buffered']
    #allocation4 [shape = 's32[1]{0}', space=sflag, size = 0x4, scoped, tag = 'scoped memory for patch_embedding.1']
    %8 = vsyncpa [#allocation4], 0
    // Predicated region
    $region2: #{patch_embedding.1} parent=1 // pred_check
      _
    $region3: #{patch_embedding.1} parent=1 // pred_check_branch
      %10 = sbr.rel (0) target = $region5
    $region4: #{patch_embedding.1} parent=1 // pred_region
      _
    $region5: #{patch_embedding.1} parent=1 // pred_fallthru
      _
    // Predicated region
    $region6: #{patch_embedding.1} parent=1 // pred_check
      _
    $region7: #{patch_embedding.1} parent=1 // pred_check_branch
      %12 = sbr.rel (0) target = $region9
    $region8: #{patch_embedding.1} parent=1 // pred_region
      _
    $region9: #{patch_embedding.1} parent=1 // pred_fallthru
      _
    // Predicated region
    $region10: #{patch_embedding.1} parent=1 // pred_check
      _
    $region11: #{patch_embedding.1} parent=1 // pred_check_branch
      %14 = sbr.rel (0) target = $region13
    $region12: #{patch_embedding.1} parent=1 // pred_region
      _
    $region13: #{patch_embedding.1} parent=1 // pred_fallthru
      _
    %p16 = scmp.eq.s32.totalorder 0, 0
    // Predicated region
    $region14: #{patch_embedding.1} parent=1 // pred_check
      %p17 = pneg %p16
    $region15: #{patch_embedding.1} parent=1 // pred_check_branch
      %19 = sbr.rel (%p17) target = $region17
    $region16: #{patch_embedding.1} parent=1 // pred_region
      %v20 = vld [vmem:[%s2] sm:$0x1]
      %v22 = vlaneseq
      %v23 = vshrl.u32 %v22, 7
      %v24 = vsub.s32 0, %v23
      %v25 = vrot.slane %v20, %v24
      %27 = vst [vmem:[#allocation2] sm:$0xff] %v25
      %28 = vst [vmem:[#allocation2 + $0x8] sm:$0xff] %v25
      %29 = vst [vmem:[#allocation2 + $0x10] sm:$0xff] %v25
      %30 = vst [vmem:[#allocation2 + $0x18] sm:$0xff] %v25
    $region17: #{patch_embedding.1} parent=1 // pred_fallthru
      _
    %v31 = vld [vmem:[#allocation2] sm:$0xff]
    %v32 = vld [vmem:[#allocation2 + $0x8] sm:$0xff]
    %v33 = vld [vmem:[#allocation2 + $0x10] sm:$0xff]
    %v34 = vld [vmem:[#allocation2 + $0x18] sm:$0xff]
    %v35 = vld [vmem:[%s0] sm:$0xf]
    %v36 = vld [vmem:[%s0 + $0x4] sm:$0xf]
    %v37 = vld [vmem:[%s0 + $0x8] sm:$0xf]
    %v38 = vld [vmem:[%s0 + $0xc] sm:$0xf]
    %v39 = vld [vmem:[%s1] sm:$0xf]
    %v40 = vld [vmem:[%s1 + $0x4] sm:$0xf]
    %v41 = vld [vmem:[%s1 + $0x8] sm:$0xf]
    %v42 = vld [vmem:[%s1 + $0xc] sm:$0xf]
    %v43 = vld [vmem:[%s1 + $0x10] sm:$0xf]
    %v44 = vld [vmem:[%s1 + $0x14] sm:$0xf]
    %v45 = vld [vmem:[%s1 + $0x18] sm:$0xf]
    %v46 = vld [vmem:[%s1 + $0x1c] sm:$0xf]
    %v47 = vld [vmem:[%s1 + $0x20] sm:$0xf]
    %v48 = vld [vmem:[%s1 + $0x24] sm:$0xf]
    %v49 = vld [vmem:[%s1 + $0x28] sm:$0xf]
    %v50 = vld [vmem:[%s1 + $0x2c] sm:$0xf]
    %v51 = vld [vmem:[%s1 + $0x30] sm:$0xf]
    %v52 = vld [vmem:[%s1 + $0x34] sm:$0xf]
    %v53 = vld [vmem:[%s1 + $0x38] sm:$0xf]
    %v54 = vld [vmem:[%s1 + $0x3c] sm:$0xf]
    %v59 = vunpack.c.l.b16 %v35
    %v60 = vunpack.c.l.b16 %v36
    %v61 = vunpack.c.l.b16 %v37
    %v62 = vunpack.c.l.b16 %v38
    %v63 = vpack.c.b16 %v60, %v59
    %v64 = vpack.c.b16 %v62, %v61
    %v83 = vunpack.c.l.b16 %v39
    %v84 = vunpack.c.l.b16 %v40
    %v85 = vunpack.c.l.b16 %v41
    %v86 = vunpack.c.l.b16 %v42
    %v87 = vunpack.c.l.b16 %v43
    %v88 = vunpack.c.l.b16 %v44
    %v89 = vunpack.c.l.b16 %v45
    %v90 = vunpack.c.l.b16 %v46
    %v91 = vunpack.c.l.b16 %v47
    %v92 = vunpack.c.l.b16 %v48
    %v93 = vunpack.c.l.b16 %v49
    %v94 = vunpack.c.l.b16 %v50
    %v95 = vunpack.c.l.b16 %v51
    %v96 = vunpack.c.l.b16 %v52
    %v97 = vunpack.c.l.b16 %v53
    %v98 = vunpack.c.l.b16 %v54
    %v99 = vpack.c.b16 %v84, %v83
    %v100 = vpack.c.b16 %v86, %v85
    %v101 = vpack.c.b16 %v88, %v87
    %v102 = vpack.c.b16 %v90, %v89
    %v103 = vpack.c.b16 %v92, %v91
    %v104 = vpack.c.b16 %v94, %v93
    %v105 = vpack.c.b16 %v96, %v95
    %v106 = vpack.c.b16 %v98, %v97
    %115 = vmatprep.subr.bf16.mxu0 0
    %116 = vmatpush1.bf16.msra.mxu0 %v106
    %117 = vmatprep.subr.bf16.mxu0 0
    %118 = vmatpush1.bf16.msra.mxu0 %v105
    %119 = vmatprep.subr.bf16.mxu0 0
    %120 = vmatpush1.bf16.msra.mxu0 %v104
    %121 = vmatprep.subr.bf16.mxu0 0
    %122 = vmatpush1.bf16.msra.mxu0 %v103
    %123 = vmatprep.subr.bf16.mxu0 0
    %124 = vmatpush1.bf16.msra.mxu0 %v102
    %125 = vmatprep.subr.bf16.mxu0 0
    %126 = vmatpush1.bf16.msra.mxu0 %v101
    %127 = vmatprep.subr.bf16.mxu0 0
    %128 = vmatpush1.bf16.msra.mxu0 %v100
    %129 = vmatprep.subr.bf16.mxu0 0
    %130 = vmatpush1.bf16.msra.mxu0 %v99
    %131 = vmatprep.subr.bf16.mxu0 0
    %132 = vmatpush2.bf16.msra.mxu0 0
    %133 = vmatprep.subr.bf16.mxu0 0
    %134 = vmatpush2.bf16.msra.mxu0 0
    %135 = vmatprep.subr.bf16.mxu0 0
    %136 = vmatpush2.bf16.msra.mxu0 0
    %137 = vmatprep.subr.bf16.mxu0 0
    %138 = vmatpush2.bf16.msra.mxu0 0
    %139 = vmatprep.subr.bf16.mxu0 0
    %140 = vmatpush2.bf16.msra.mxu0 0
    %141 = vmatprep.subr.bf16.mxu0 0
    %142 = vmatpush2.bf16.msra.mxu0 0
    %143 = vmatprep.subr.bf16.mxu0 0
    %144 = vmatpush2.bf16.msra.mxu0 0
    %145 = vmatprep.subr.bf16.mxu0 0
    %146 = vmatpush2.bf16.msra.mxu0 0
    %147 = vmatprep.mubr.bf16.mxu0 0
    %148 = vmatmul.mubr.bf16.gmra.mxu0 %v63
    %v149 = vpop.f32.mrf.mxu0
    %v150 = vadd.f32 0.0, %v149
    %v151 = vpop.f32.mrf.mxu0
    %v152 = vpop.f32.mrf.mxu0
    %v153 = vadd.f32 0.0, %v152
    %v154 = vpop.f32.mrf.mxu0
    %155 = vmatprep.mubr.bf16.mxu0 0
    %156 = vmatmul.mubr.bf16.gmra.mxu0 %v64
    %v157 = vpop.f32.mrf.mxu0
    %v158 = vadd.f32 0.0, %v157
    %v159 = vpop.f32.mrf.mxu0
    %v160 = vpop.f32.mrf.mxu0
    %v161 = vadd.f32 0.0, %v160
    %v162 = vpop.f32.mrf.mxu0
    %163 = vdwg.mxu0
    %v164 = vadd.f32 %v31, %v150
    %v165 = vadd.f32 %v32, %v153
    %v166 = vadd.f32 %v33, %v158
    %v167 = vadd.f32 %v34, %v161
    %168 = vst [vmem:[#allocation2] sm:$0xff] %v164
    %169 = vst [vmem:[#allocation2 + $0x8] sm:$0xff] %v165
    %170 = vst [vmem:[#allocation2 + $0x10] sm:$0xff] %v166
    %171 = vst [vmem:[#allocation2 + $0x18] sm:$0xff] %v167
    // Predicated region
    $region18: #{patch_embedding.1} parent=1 // pred_check
      %p172 = pneg %p16
    $region19: #{patch_embedding.1} parent=1 // pred_check_branch
      %174 = sbr.rel (%p172) target = $region21
    $region20: #{patch_embedding.1} parent=1 // pred_region
      %v175 = vld [vmem:[#allocation2] sm:$0xff]
      %v176 = vld [vmem:[#allocation2 + $0x8] sm:$0xff]
      %v177 = vld [vmem:[#allocation2 + $0x10] sm:$0xff]
      %v178 = vld [vmem:[#allocation2 + $0x18] sm:$0xff]
      %179 = vst [vmem:[#allocation3] sm:$0xff] %v175
      %180 = vst [vmem:[#allocation3 + $0x8] sm:$0xff] %v176
      %181 = vst [vmem:[#allocation3 + $0x10] sm:$0xff] %v177
      %182 = vst [vmem:[#allocation3 + $0x18] sm:$0xff] %v178
    $region21: #{patch_embedding.1} parent=1 // pred_fallthru
      _
    // Predicated region
    $region22: #{patch_embedding.1} parent=1 // pred_check
      _
    $region23: #{patch_embedding.1} parent=1 // pred_check_branch
      %184 = sbr.rel (0) target = $region25
    $region24: #{patch_embedding.1} parent=1 // pred_region
      %s186 = ssub.s32 512, 512
      %187 = vsyncadd [#allocation4], %s186
      %s188 = sshll.u32 [#allocation3], 4
      %s189 = int_to_ptr.vmem [resolvable:$true] %s188
      %194 = dma.vmem_to_hbm [thread:$0]  %s189, 512, %s3, [#allocation4], 128, 128, 8
    $region25: #{patch_embedding.1} parent=1 // pred_fallthru
      _
    // Predicated region
    $region26: #{patch_embedding.1} parent=1 // pred_check
      _
    $region27: #{patch_embedding.1} parent=1 // pred_check_branch
      %196 = sbr.rel (0) target = $region29
    $region28: #{patch_embedding.1} parent=1 // pred_region
      %197 = dma.done [#allocation4], 512
    $region29: #{patch_embedding.1} parent=1 // pred_fallthru
      _
    %198 = vsyncpa [#allocation4], 1

</llo_original>
